<compile_context>
chip_gen: v6e
topology: v6e:2x2x1
jax: 0.10.0
libtpu: 0.0.40
codegen_flags: <defaults>
</compile_context>

<pallas_src>
import jax
import jax.numpy as jnp
from jax.experimental import pallas as pl
from jax.experimental.pallas import tpu as pltpu

LANE = 128  # TPU lane width; feature dims are padded to this where needed.


def attention_decoder_kernel(
    enc_ref,    # (Np, S, 128) f32   encoder states, lanes [0:2H) real, rest 0 (resident)
    embx_ref,   # (1, Np, 128) f32   per-step embedding, lanes [2H:2H+E) real, rest 0
    h0_ref,     # (Np, H)      f32   initial hidden (resident)
    c0_ref,     # (Np, H)      f32   initial cell   (resident)
    wce_ref,    # (128, 128)   bf16  fused [ctx|emb] gate weight, cols [0:4H) real
    whh_ref,    # (H, 128)     bf16  hidden gate weight, cols [0:4H) real
    wout_ref,   # (H, 128)     bf16  output projection, cols [0:O) real
    vecs_ref,   # (8, 128)     f32   row0: gate bias, row1: out bias, row2: we_enc,
                #                    row3: we_h, row4: b_e (lane 0)
    out_ref,    # (1, Np, 128) f32   per-step logits slab (lane-dense)
    h_ref,      # (Np, H)      f32   hidden carry across steps == final hidden output
    c_ref,      # (Np, H)      f32   cell   carry across steps == final cell   output
):
    H = h_ref.shape[-1]
    t = pl.program_id(0)

    # Initialize the resident h/c carry from the kernel inputs on the first step.
    @pl.when(t == 0)
    def _():
        h_ref[...] = h0_ref[...]
        c_ref[...] = c0_ref[...]

    enc = enc_ref[...]                                   # (Np, S, 128)
    h = h_ref[...]                                       # (Np, H)
    c = c_ref[...]                                       # (Np, H)

    we_enc = vecs_ref[2:3, :]                            # (1, 128), zero beyond 2H
    we_h = vecs_ref[3:4, 0:H]                            # (1, H)
    b_e = vecs_ref[4:5, 0:1]                             # (1, 1)

    # --- energy = relu(Linear_{3H->1}([h ; enc])) computed as (Np, S) -------------
    # S sits on the lane axis so the softmax below is a pure lane reduction.
    # TODO(synk): at production S the S<->lane relayouts around ctx should be
    #             restructured (softmax over sublanes or (N*S,128) MXU dots).
    e_enc = jnp.sum(enc * we_enc[:, None, :], axis=-1)                  # (Np, S)
    e_hid = jnp.sum(h * we_h, axis=-1, keepdims=True) + b_e             # (Np, 1)
    energy = jnp.maximum(e_enc + e_hid, 0.0)                            # (Np, S)

    # --- softmax over the sequence axis (lanes); exact reciprocal (one/step, free) -
    m = jnp.max(energy, axis=-1, keepdims=True)
    p = jnp.exp(energy - m)
    inv = pl.reciprocal(jnp.sum(p, axis=-1, keepdims=True), approx=False)
    attn = p * inv                                                      # (Np, S)

    # --- context vector; lanes [2H:128) provably stay zero ------------------------
    ctx = jnp.sum(attn[:, :, None] * enc, axis=1)                       # (Np, 128)

    # --- LSTM gates: one fused (128,128) dot for [ctx|emb] + one small h dot -------
    # x lanes: [ctx 0:2H | emb 2H:2H+E | 0 ...]; the wrapper packed emb into embx.
    x_bf = (ctx + embx_ref[0]).astype(jnp.bfloat16)                     # (Np, 128)
    gates = jnp.dot(x_bf, wce_ref[...], preferred_element_type=jnp.float32)
    gates = gates + jnp.dot(h.astype(jnp.bfloat16), whh_ref[...],
                            preferred_element_type=jnp.float32)
    gates = gates + vecs_ref[0:1, :]                                    # (Np, 128)

    # PyTorch LSTM gate order: i, f, g, o (H-wide slices; 4H == 128 here).
    i_g = jax.nn.sigmoid(gates[:, 0 * H:1 * H])
    f_g = jax.nn.sigmoid(gates[:, 1 * H:2 * H])
    g_g = jnp.tanh(gates[:, 2 * H:3 * H])
    o_g = jax.nn.sigmoid(gates[:, 3 * H:4 * H])

    c_new = f_g * c + i_g * g_g                                         # (Np, H)
    h_new = o_g * jnp.tanh(c_new)                                       # (Np, H)
    c_ref[...] = c_new
    h_ref[...] = h_new

    # --- output projection; lane-dense (Np, 128) store, real logits in [0:O) ------
    out = jnp.dot(h_new.astype(jnp.bfloat16), wout_ref[...],
                  preferred_element_type=jnp.float32) + vecs_ref[1:2, :]
    out_ref[0] = out


def pack_params(p, hidden_size, output_size, emb_dim):
    """One-time repack of the PyTorch-layout params into the kernel layout (bf16 MXU weights)."""
    H, O, E = hidden_size, output_size, emb_dim
    G = LANE
    assert 2 * H + E <= G and 4 * H <= G and O <= G, "toy sizes must fit one lane block"
    f32, bf16 = jnp.float32, jnp.bfloat16

    # Fused [ctx|emb] gate weight: rows follow the x lane layout, columns are natural i|f|g|o.
    w_ce = jnp.zeros((G, G), f32)
    w_ce = w_ce.at[0:2 * H, 0:4 * H].set(p["w_ih_ctx"])
    w_ce = w_ce.at[2 * H:2 * H + E, 0:4 * H].set(p["w_ih_emb"])

    w_hh = jnp.zeros((H, G), f32).at[:, 0:4 * H].set(p["w_hh"])
    w_out = jnp.zeros((H, G), f32).at[:, 0:O].set(p["w_out"])

    vecs = jnp.zeros((8, G), f32)
    vecs = vecs.at[0, 0:4 * H].set((p["b_ih"] + p["b_hh"]).reshape(4 * H))  # fused LSTM bias
    vecs = vecs.at[1, 0:O].set(p["b_out"].reshape(O))
    vecs = vecs.at[2, 0:2 * H].set(p["we_enc"].reshape(2 * H))
    vecs = vecs.at[3, 0:H].set(p["we_h"].reshape(H))
    vecs = vecs.at[4, 0].set(p["b_e"][0, 0])

    return dict(
        emb_table=p["emb_table"],
        w_ce=w_ce.astype(bf16),
        w_hh=w_hh.astype(bf16),
        w_out=w_out.astype(bf16),
        vecs=vecs,
        output_size=O,
    )


def attention_decoder_decode(packed, input_ids, encoder_states, hidden, cell):
    """Fused multi-step decode (teacher forcing).

    input_ids: (T, N) int32; encoder_states: (S, N, 2H); hidden/cell: (1, N, H).
    Returns (logits (T, N, O), h_final (1, N, H), c_final (1, N, H)).
    """
    T, N = input_ids.shape
    S, _, twoH = encoder_states.shape
    H = hidden.shape[-1]
    E = packed["emb_table"].shape[1]
    O = packed["output_size"]
    G = LANE
    Np = max(8, ((N + 7) // 8) * 8)          # pad batch to a full sublane group
    f32 = jnp.float32

    # --- one-time (per decode, NOT per step) layout prep in plain JAX -------------
    enc = jnp.transpose(encoder_states, (1, 0, 2))                       # (N, S, 2H)
    enc_pad = jnp.zeros((Np, S, G), f32).at[:N, :, :twoH].set(enc)       # (Np, S, 128)
    emb = jnp.take(packed["emb_table"], input_ids.reshape(-1), axis=0)   # (T*N, E)
    emb = emb.reshape(T, N, E)
    embx = jnp.zeros((T, Np, G), f32).at[:, :N, twoH:twoH + E].set(emb)  # (T, Np, 128)
    h0 = jnp.zeros((Np, H), f32).at[:N].set(hidden[0])
    c0 = jnp.zeros((Np, H), f32).at[:N].set(cell[0])

    logits_pad, h_f, c_f = pl.pallas_call(
        attention_decoder_kernel,
        out_shape=(
            jax.ShapeDtypeStruct((T, Np, G), f32),   # per-step logits slab
            jax.ShapeDtypeStruct((Np, H), f32),      # final hidden
            jax.ShapeDtypeStruct((Np, H), f32),      # final cell
        ),
        grid=(T,),
        in_specs=[
            pl.BlockSpec((Np, S, G), lambda t: (0, 0, 0)),   # encoder states (resident)
            pl.BlockSpec((1, Np, G), lambda t: (t, 0, 0)),   # per-step embedding block
            pl.BlockSpec((Np, H), lambda t: (0, 0)),         # h0 (resident)
            pl.BlockSpec((Np, H), lambda t: (0, 0)),         # c0 (resident)
            pl.BlockSpec((G, G), lambda t: (0, 0)),          # w_ce (resident)
            pl.BlockSpec((H, G), lambda t: (0, 0)),          # w_hh (resident)
            pl.BlockSpec((H, G), lambda t: (0, 0)),          # w_out (resident)
            pl.BlockSpec((8, G), lambda t: (0, 0)),          # packed bias / energy vectors
        ],
        out_specs=(
            pl.BlockSpec((1, Np, G), lambda t: (t, 0, 0)),   # logits per step
            pl.BlockSpec((Np, H), lambda t: (0, 0)),         # h carry (constant block)
            pl.BlockSpec((Np, H), lambda t: (0, 0)),         # c carry (constant block)
        ),
        compiler_params=pltpu.CompilerParams(
            dimension_semantics=("arbitrary",)),             # steps carry h/c -> sequential
    )(enc_pad, embx, h0, c0,
      packed["w_ce"], packed["w_hh"], packed["w_out"], packed["vecs"])

    logits = logits_pad[:, :N, :O]
    return logits, h_f[None, :N, :], c_f[None, :N, :]


def attention_decoder(packed, input_ids, encoder_states, hidden, cell):
    """Single decoder step == the PyTorch module's forward. input_ids: (N,)."""
    logits, h, c = attention_decoder_decode(
        packed, input_ids[None, :], encoder_states, hidden, cell)
    return logits[0], h, c


def init_params(key, hidden_size, output_size, emb_dim, vocab=100):
    H, O, E = hidden_size, output_size, emb_dim
    ks = jax.random.split(key, 11)

    def u(k, shape, fan_in):
        bound = 1.0 / (fan_in ** 0.5)
        return jax.random.uniform(k, shape, jnp.float32, -bound, bound)

    return dict(
        emb_table=jax.random.normal(ks[0], (vocab, E), jnp.float32),
        we_h=u(ks[1], (1, H), 3 * H),
        we_enc=u(ks[2], (1, 2 * H), 3 * H),
        b_e=u(ks[3], (1, 1), 3 * H),
        w_ih_ctx=u(ks[4], (2 * H, 4 * H), 2 * H + E),
        w_ih_emb=u(ks[5], (E, 4 * H), 2 * H + E),
        w_hh=u(ks[6], (H, 4 * H), H),
        b_ih=u(ks[7], (1, 4 * H), H),
        b_hh=u(ks[8], (1, 4 * H), H),
        w_out=u(ks[9], (H, O), H),
        b_out=u(ks[10], (1, O), H),
    )


def reference_step(params, input_ids, enc, hidden, cell):
    """Pure-JAX f32 transcription of the PyTorch forward (for verification)."""
    emb = params["emb_table"][input_ids]                                        # (N, E)
    h, c = hidden[0], cell[0]
    S = enc.shape[0]
    H = h.shape[-1]
    h_rep = jnp.broadcast_to(h[None], (S,) + h.shape)                           # hidden.repeat(S,1,1)
    cat = jnp.concatenate([h_rep, enc], axis=2)                                 # (S, N, 3H)
    w_energy = jnp.concatenate([params["we_h"], params["we_enc"]], axis=1)      # (1, 3H)
    energy = jax.nn.relu(cat @ w_energy.T + params["b_e"][0])                   # (S, N, 1)
    attn = jax.nn.softmax(energy, axis=0)
    ctx = jnp.einsum("snk,snl->knl", attn, enc)[0]                              # (N, 2H)
    x = jnp.concatenate([ctx, emb], axis=1)                                     # (N, 2H+E)
    w_ih = jnp.concatenate([params["w_ih_ctx"], params["w_ih_emb"]], axis=0)    # (2H+E, 4H)
    gates = x @ w_ih + h @ params["w_hh"] + params["b_ih"] + params["b_hh"]
    i = jax.nn.sigmoid(gates[:, :H])
    f = jax.nn.sigmoid(gates[:, H:2 * H])
    g = jnp.tanh(gates[:, 2 * H:3 * H])
    o = jax.nn.sigmoid(gates[:, 3 * H:4 * H])
    c_new = f * c + i * g
    h_new = o * jnp.tanh(c_new)
    out = h_new @ params["w_out"] + params["b_out"]
    return out, h_new[None], c_new[None]


def reference_decode(params, input_ids, enc, hidden, cell):
    outs = []
    h, c = hidden, cell
    for t in range(input_ids.shape[0]):
        o, h, c = reference_step(params, input_ids[t], enc, h, c)
        outs.append(o)
    return jnp.stack(outs, axis=0), h, c


def _check(name, got, want, tol=2e-2):
    # Tolerance reflects bf16 MXU operands (weights / LSTM inputs); the softmax
    # reciprocal is exact, so bf16 rounding is the only approximation.
    assert got.shape == want.shape, (name, got.shape, want.shape)
    err = float(jnp.max(jnp.abs(got - want)))
    assert err < tol, (name, err)


if __name__ == "__main__":
    # hidden_size=32, output_size=16, emb_dim=16, num_layers=1, p=0.0
    H, O, E, L = 32, 16, 16, 1
    N, S, T = 4, 8, 6                              # batch, encoder length, decode steps

    key = jax.random.PRNGKey(0)
    kp, k1, k2, k3, k4 = jax.random.split(key, 5)
    params = init_params(kp, H, O, E)
    packed = pack_params(params, H, O, E)

    input_ids = jax.random.randint(k1, (T, N), 0, 100, dtype=jnp.int32)          # (T, N)
    encoder_states = jax.random.normal(k2, (S, N, 2 * H), jnp.float32)           # (S, N, 2H)
    hidden = jax.random.normal(k3, (L, N, H), jnp.float32)                       # (1, N, H)
    cell = jax.random.normal(k4, (L, N, H), jnp.float32)                         # (1, N, H)

    # --- single step: exactly the module's forward ---------------------------------
    out1, h1, c1 = jax.block_until_ready(
        attention_decoder(packed, input_ids[0], encoder_states, hidden, cell))
    ro, rh, rc = reference_step(params, input_ids[0], encoder_states, hidden, cell)
    _check("step_out", out1, ro)
    _check("step_h", h1, rh)
    _check("step_c", c1, rc)

    # --- fused multi-step decode (one pallas_call, weights resident) ---------------
    outs, hT, cT = jax.block_until_ready(
        attention_decoder_decode(packed, input_ids, encoder_states, hidden, cell))
    ros, rhT, rcT = reference_decode(params, input_ids, encoder_states, hidden, cell)
    _check("decode_out", outs, ros)
    _check("decode_h", hT, rhT)
    _check("decode_c", cT, rcT)

    print("KERNEL_OK")
</pallas_src>

<mosaic_0001>
module attributes {stable_mosaic.version = 11 : i64} {
  func.func @attention_decoder_kernel(%arg0: i32, %arg1: memref<8x8x128xf32, #tpu.memory_space<vmem>>, %arg2: memref<1x8x128xf32, #tpu.memory_space<vmem>>, %arg3: memref<8x32xf32, #tpu.memory_space<vmem>>, %arg4: memref<8x32xf32, #tpu.memory_space<vmem>>, %arg5: memref<128x128xbf16, #tpu.memory_space<vmem>>, %arg6: memref<32x128xbf16, #tpu.memory_space<vmem>>, %arg7: memref<32x128xbf16, #tpu.memory_space<vmem>>, %arg8: memref<8x128xf32, #tpu.memory_space<vmem>>, %arg9: memref<1x8x128xf32, #tpu.memory_space<vmem>>, %arg10: memref<8x32xf32, #tpu.memory_space<vmem>>, %arg11: memref<8x32xf32, #tpu.memory_space<vmem>>) attributes {dimension_semantics = [#tpu.dimension_semantics<arbitrary>], iteration_bounds = array<i64: 1>, scalar_prefetch = 0 : i64, scratch_operands = 0 : i64, tpu.core_type = #tpu.core_type<tc>, window_params = [{pipeline_mode = #tpu.pipeline_mode<synchronous>, transform_indices = @transform_0, window_bounds = array<i64: 8, 8, 128>}, {transform_indices = @transform_1, window_bounds = array<i64: 1, 8, 128>}, {pipeline_mode = #tpu.pipeline_mode<synchronous>, transform_indices = @transform_2, window_bounds = array<i64: 8, 32>}, {pipeline_mode = #tpu.pipeline_mode<synchronous>, transform_indices = @transform_3, window_bounds = array<i64: 8, 32>}, {pipeline_mode = #tpu.pipeline_mode<synchronous>, transform_indices = @transform_4, window_bounds = array<i64: 128, 128>}, {pipeline_mode = #tpu.pipeline_mode<synchronous>, transform_indices = @transform_5, window_bounds = array<i64: 32, 128>}, {pipeline_mode = #tpu.pipeline_mode<synchronous>, transform_indices = @transform_6, window_bounds = array<i64: 32, 128>}, {pipeline_mode = #tpu.pipeline_mode<synchronous>, transform_indices = @transform_7, window_bounds = array<i64: 8, 128>}, {transform_indices = @transform_8, window_bounds = array<i64: 1, 8, 128>}, {pipeline_mode = #tpu.pipeline_mode<synchronous>, transform_indices = @transform_9, window_bounds = array<i64: 8, 32>}, {pipeline_mode = #tpu.pipeline_mode<synchronous>, transform_indices = @transform_10, window_bounds = array<i64: 8, 32>}]} {
    %c0_i32 = arith.constant 0 : i32
    %0 = arith.cmpi eq, %arg0, %c0_i32 : i32
    %1 = arith.extui %0 : i1 to i32
    %c0_i32_0 = arith.constant 0 : i32
    %2 = arith.cmpi ne, %1, %c0_i32_0 : i32
    scf.if %2 {
      %c0_40 = arith.constant 0 : index
      %c0_41 = arith.constant 0 : index
      %86 = vector.load %arg3[%c0_40, %c0_41] : memref<8x32xf32, #tpu.memory_space<vmem>>, vector<8x32xf32>
      %c0_42 = arith.constant 0 : index
      %c0_43 = arith.constant 0 : index
      %87 = vector.load %arg10[%c0_42, %c0_43] : memref<8x32xf32, #tpu.memory_space<vmem>>, vector<8x32xf32>
      tpu.vector_store %arg10[%c0_42, %c0_43], %86 {strides = array<i32>} : memref<8x32xf32, #tpu.memory_space<vmem>>, vector<8x32xf32>,
      %c0_44 = arith.constant 0 : index
      %c0_45 = arith.constant 0 : index
      %88 = vector.load %arg4[%c0_44, %c0_45] : memref<8x32xf32, #tpu.memory_space<vmem>>, vector<8x32xf32>
      %c0_46 = arith.constant 0 : index
      %c0_47 = arith.constant 0 : index
      %89 = vector.load %arg11[%c0_46, %c0_47] : memref<8x32xf32, #tpu.memory_space<vmem>>, vector<8x32xf32>
      tpu.vector_store %arg11[%c0_46, %c0_47], %88 {strides = array<i32>} : memref<8x32xf32, #tpu.memory_space<vmem>>, vector<8x32xf32>,
    } else {
    }
    %c0 = arith.constant 0 : index
    %c0_1 = arith.constant 0 : index
    %c0_2 = arith.constant 0 : index
    %3 = vector.load %arg1[%c0, %c0_1, %c0_2] : memref<8x8x128xf32, #tpu.memory_space<vmem>>, vector<8x8x128xf32>
    %c0_3 = arith.constant 0 : index
    %c0_4 = arith.constant 0 : index
    %4 = vector.load %arg10[%c0_3, %c0_4] : memref<8x32xf32, #tpu.memory_space<vmem>>, vector<8x32xf32>
    %c0_5 = arith.constant 0 : index
    %c0_6 = arith.constant 0 : index
    %5 = vector.load %arg11[%c0_5, %c0_6] : memref<8x32xf32, #tpu.memory_space<vmem>>, vector<8x32xf32>
    %c2 = arith.constant 2 : index
    %c0_7 = arith.constant 0 : index
    %6 = vector.load %arg8[%c2, %c0_7] : memref<8x128xf32, #tpu.memory_space<vmem>>, vector<1x128xf32>
    %c3 = arith.constant 3 : index
    %c0_8 = arith.constant 0 : index
    %7 = vector.load %arg8[%c3, %c0_8] : memref<8x128xf32, #tpu.memory_space<vmem>>, vector<1x32xf32>
    %c4 = arith.constant 4 : index
    %c0_9 = arith.constant 0 : index
    %8 = vector.load %arg8[%c4, %c0_9] : memref<8x128xf32, #tpu.memory_space<vmem>>, vector<1x1xf32>
    %9 = vector.shape_cast %6 : vector<1x128xf32> to vector<1x1x128xf32>
    %10 = vector.broadcast %9 : vector<1x1x128xf32> to vector<8x8x128xf32>
    %11 = arith.mulf %3, %10 : vector<8x8x128xf32>
    %cst = arith.constant dense<0.000000e+00> : vector<8x8xf32>
    %12 = vector.multi_reduction <add>, %11, %cst [2] : vector<8x8x128xf32> to vector<8x8xf32>
    %13 = vector.broadcast %7 : vector<1x32xf32> to vector<8x32xf32>
    %14 = arith.mulf %4, %13 : vector<8x32xf32>
    %cst_10 = arith.constant dense<0.000000e+00> : vector<8xf32>
    %15 = vector.multi_reduction <add>, %14, %cst_10 [1] : vector<8x32xf32> to vector<8xf32>
    %16 = vector.shape_cast %15 : vector<8xf32> to vector<8x1xf32>
    %17 = vector.broadcast %8 : vector<1x1xf32> to vector<8x1xf32>
    %18 = arith.addf %16, %17 : vector<8x1xf32>
    %19 = vector.broadcast %18 : vector<8x1xf32> to vector<8x8xf32>
    %20 = arith.addf %12, %19 : vector<8x8xf32>
    %cst_11 = arith.constant 0.000000e+00 : f32
    %21 = vector.broadcast %cst_11 : f32 to vector<8x8xf32>
    %22 = arith.maximumf %20, %21 : vector<8x8xf32>
    %cst_12 = arith.constant dense<0xFF800000> : vector<8xf32>
    %23 = vector.multi_reduction <maximumf>, %22, %cst_12 [1] : vector<8x8xf32> to vector<8xf32>
    %24 = vector.shape_cast %23 : vector<8xf32> to vector<8x1xf32>
    %25 = vector.broadcast %24 : vector<8x1xf32> to vector<8x8xf32>
    %26 = arith.subf %22, %25 : vector<8x8xf32>
    %27 = math.exp %26 : vector<8x8xf32>
    %cst_13 = arith.constant dense<0.000000e+00> : vector<8xf32>
    %28 = vector.multi_reduction <add>, %27, %cst_13 [1] : vector<8x8xf32> to vector<8xf32>
    %29 = vector.shape_cast %28 : vector<8xf32> to vector<8x1xf32>
    %30 = tpu.reciprocal %29 : vector<8x1xf32> -> vector<8x1xf32>
    %31 = vector.broadcast %30 : vector<8x1xf32> to vector<8x8xf32>
    %32 = arith.mulf %27, %31 : vector<8x8xf32>
    %33 = vector.shape_cast %32 : vector<8x8xf32> to vector<8x8x1xf32>
    %34 = vector.broadcast %33 : vector<8x8x1xf32> to vector<8x8x128xf32>
    %35 = arith.mulf %34, %3 : vector<8x8x128xf32>
    %cst_14 = arith.constant dense<0.000000e+00> : vector<8x128xf32>
    %36 = vector.multi_reduction <add>, %35, %cst_14 [1] : vector<8x8x128xf32> to vector<8x128xf32>
    %c0_15 = arith.constant 0 : index
    %c0_16 = arith.constant 0 : index
    %c0_17 = arith.constant 0 : index
    %37 = vector.load %arg2[%c0_15, %c0_16, %c0_17] : memref<1x8x128xf32, #tpu.memory_space<vmem>>, vector<1x8x128xf32>
    %38 = vector.shape_cast %37 : vector<1x8x128xf32> to vector<8x128xf32>
    %39 = arith.addf %36, %38 : vector<8x128xf32>
    %40 = arith.truncf %39 : vector<8x128xf32> to vector<8x128xbf16>
    %c0_18 = arith.constant 0 : index
    %c0_19 = arith.constant 0 : index
    %41 = vector.load %arg5[%c0_18, %c0_19] : memref<128x128xbf16, #tpu.memory_space<vmem>>, vector<128x128xbf16>
    %cst_20 = arith.constant dense<0.000000e+00> : vector<8x128xf32>
    %42 = tpu.matmul %40, %41, %cst_20 {dimension_numbers = #tpu.dot_dimension_numbers<[1], [0], [0], [1], [0, 0, 1, 1], [], []>} : vector<8x128xbf16>, vector<128x128xbf16>, vector<8x128xf32> -> vector<8x128xf32>
    %43 = arith.truncf %4 : vector<8x32xf32> to vector<8x32xbf16>
    %c0_21 = arith.constant 0 : index
    %c0_22 = arith.constant 0 : index
    %44 = vector.load %arg6[%c0_21, %c0_22] : memref<32x128xbf16, #tpu.memory_space<vmem>>, vector<32x128xbf16>
    %cst_23 = arith.constant dense<0.000000e+00> : vector<8x128xf32>
    %45 = tpu.matmul %43, %44, %cst_23 {dimension_numbers = #tpu.dot_dimension_numbers<[1], [0], [0], [1], [0, 0, 1, 1], [], []>} : vector<8x32xbf16>, vector<32x128xbf16>, vector<8x128xf32> -> vector<8x128xf32>
    %46 = arith.addf %42, %45 : vector<8x128xf32>
    %c0_24 = arith.constant 0 : index
    %c0_25 = arith.constant 0 : index
    %47 = vector.load %arg8[%c0_24, %c0_25] : memref<8x128xf32, #tpu.memory_space<vmem>>, vector<1x128xf32>
    %48 = vector.broadcast %47 : vector<1x128xf32> to vector<8x128xf32>
    %49 = arith.addf %46, %48 : vector<8x128xf32>
    %50 = vector.extract_strided_slice %49 {offsets = [0, 0], sizes = [8, 32], strides = [1, 1]} : vector<8x128xf32> to vector<8x32xf32>
    %51 = arith.negf %50 : vector<8x32xf32>
    %52 = math.exp %51 : vector<8x32xf32>
    %cst_26 = arith.constant 1.000000e+00 : f32
    %53 = vector.broadcast %cst_26 : f32 to vector<8x32xf32>
    %54 = arith.addf %53, %52 : vector<8x32xf32>
    %55 = arith.divf %53, %54 : vector<8x32xf32>
    %56 = vector.extract_strided_slice %49 {offsets = [0, 32], sizes = [8, 32], strides = [1, 1]} : vector<8x128xf32> to vector<8x32xf32>
    %57 = arith.negf %56 : vector<8x32xf32>
    %58 = math.exp %57 : vector<8x32xf32>
    %cst_27 = arith.constant 1.000000e+00 : f32
    %59 = vector.broadcast %cst_27 : f32 to vector<8x32xf32>
    %60 = arith.addf %59, %58 : vector<8x32xf32>
    %61 = arith.divf %59, %60 : vector<8x32xf32>
    %62 = vector.extract_strided_slice %49 {offsets = [0, 64], sizes = [8, 32], strides = [1, 1]} : vector<8x128xf32> to vector<8x32xf32>
    %63 = math.tanh %62 : vector<8x32xf32>
    %64 = vector.extract_strided_slice %49 {offsets = [0, 96], sizes = [8, 32], strides = [1, 1]} : vector<8x128xf32> to vector<8x32xf32>
    %65 = arith.negf %64 : vector<8x32xf32>
    %66 = math.exp %65 : vector<8x32xf32>
    %cst_28 = arith.constant 1.000000e+00 : f32
    %67 = vector.broadcast %cst_28 : f32 to vector<8x32xf32>
    %68 = arith.addf %67, %66 : vector<8x32xf32>
    %69 = arith.divf %67, %68 : vector<8x32xf32>
    %70 = arith.mulf %61, %5 : vector<8x32xf32>
    %71 = arith.mulf %55, %63 : vector<8x32xf32>
    %72 = arith.addf %70, %71 : vector<8x32xf32>
    %73 = math.tanh %72 : vector<8x32xf32>
    %74 = arith.mulf %69, %73 : vector<8x32xf32>
    %c0_29 = arith.constant 0 : index
    %c0_30 = arith.constant 0 : index
    %75 = vector.load %arg11[%c0_29, %c0_30] : memref<8x32xf32, #tpu.memory_space<vmem>>, vector<8x32xf32>
    tpu.vector_store %arg11[%c0_29, %c0_30], %72 {strides = array<i32>} : memref<8x32xf32, #tpu.memory_space<vmem>>, vector<8x32xf32>,
    %c0_31 = arith.constant 0 : index
    %c0_32 = arith.constant 0 : index
    %76 = vector.load %arg10[%c0_31, %c0_32] : memref<8x32xf32, #tpu.memory_space<vmem>>, vector<8x32xf32>
    tpu.vector_store %arg10[%c0_31, %c0_32], %74 {strides = array<i32>} : memref<8x32xf32, #tpu.memory_space<vmem>>, vector<8x32xf32>,
    %77 = arith.truncf %74 : vector<8x32xf32> to vector<8x32xbf16>
    %c0_33 = arith.constant 0 : index
    %c0_34 = arith.constant 0 : index
    %78 = vector.load %arg7[%c0_33, %c0_34] : memref<32x128xbf16, #tpu.memory_space<vmem>>, vector<32x128xbf16>
    %cst_35 = arith.constant dense<0.000000e+00> : vector<8x128xf32>
    %79 = tpu.matmul %77, %78, %cst_35 {dimension_numbers = #tpu.dot_dimension_numbers<[1], [0], [0], [1], [0, 0, 1, 1], [], []>} : vector<8x32xbf16>, vector<32x128xbf16>, vector<8x128xf32> -> vector<8x128xf32>
    %c1 = arith.constant 1 : index
    %c0_36 = arith.constant 0 : index
    %80 = vector.load %arg8[%c1, %c0_36] : memref<8x128xf32, #tpu.memory_space<vmem>>, vector<1x128xf32>
    %81 = vector.broadcast %80 : vector<1x128xf32> to vector<8x128xf32>
    %82 = arith.addf %79, %81 : vector<8x128xf32>
    %c0_37 = arith.constant 0 : index
    %c0_38 = arith.constant 0 : index
    %c0_39 = arith.constant 0 : index
    %83 = vector.load %arg9[%c0_37, %c0_38, %c0_39] : memref<1x8x128xf32, #tpu.memory_space<vmem>>, vector<1x8x128xf32>
    %84 = vector.shape_cast %83 : vector<1x8x128xf32> to vector<8x128xf32>
    %85 = vector.shape_cast %82 : vector<8x128xf32> to vector<1x8x128xf32>
    tpu.vector_store %arg9[%c0_37, %c0_38, %c0_39], %85 {strides = array<i32>} : memref<1x8x128xf32, #tpu.memory_space<vmem>>, vector<1x8x128xf32>,
    return
  }
  func.func @transform_0(%arg0: i32) -> (i32, i32, i32) {
    %c0_i32 = arith.constant 0 : i32
    %c0_i32_0 = arith.constant 0 : i32
    %c0_i32_1 = arith.constant 0 : i32
    %c0_i32_2 = arith.constant 0 : i32
    return %c0_i32, %c0_i32_0, %c0_i32_1 : i32, i32, i32
  }
  func.func @transform_1(%arg0: i32) -> (i32, i32, i32) {
    %c0_i32 = arith.constant 0 : i32
    %c0_i32_0 = arith.constant 0 : i32
    %c0_i32_1 = arith.constant 0 : i32
    return %arg0, %c0_i32, %c0_i32_0 : i32, i32, i32
  }
  func.func @transform_2(%arg0: i32) -> (i32, i32) {
    %c0_i32 = arith.constant 0 : i32
    %c0_i32_0 = arith.constant 0 : i32
    %c0_i32_1 = arith.constant 0 : i32
    return %c0_i32, %c0_i32_0 : i32, i32
  }
  func.func @transform_3(%arg0: i32) -> (i32, i32) {
    %c0_i32 = arith.constant 0 : i32
    %c0_i32_0 = arith.constant 0 : i32
    %c0_i32_1 = arith.constant 0 : i32
    return %c0_i32, %c0_i32_0 : i32, i32
  }
  func.func @transform_4(%arg0: i32) -> (i32, i32) {
    %c0_i32 = arith.constant 0 : i32
    %c0_i32_0 = arith.constant 0 : i32
    %c0_i32_1 = arith.constant 0 : i32
    return %c0_i32, %c0_i32_0 : i32, i32
  }
  func.func @transform_5(%arg0: i32) -> (i32, i32) {
    %c0_i32 = arith.constant 0 : i32
    %c0_i32_0 = arith.constant 0 : i32
    %c0_i32_1 = arith.constant 0 : i32
    return %c0_i32, %c0_i32_0 : i32, i32
  }
  func.func @transform_6(%arg0: i32) -> (i32, i32) {
    %c0_i32 = arith.constant 0 : i32
    %c0_i32_0 = arith.constant 0 : i32
    %c0_i32_1 = arith.constant 0 : i32
    return %c0_i32, %c0_i32_0 : i32, i32
  }
  func.func @transform_7(%arg0: i32) -> (i32, i32) {
    %c0_i32 = arith.constant 0 : i32
    %c0_i32_0 = arith.constant 0 : i32
    %c0_i32_1 = arith.constant 0 : i32
    return %c0_i32, %c0_i32_0 : i32, i32
  }
  func.func @transform_8(%arg0: i32) -> (i32, i32, i32) {
    %c0_i32 = arith.constant 0 : i32
    %c0_i32_0 = arith.constant 0 : i32
    %c0_i32_1 = arith.constant 0 : i32
    return %arg0, %c0_i32, %c0_i32_0 : i32, i32, i32
  }
  func.func @transform_9(%arg0: i32) -> (i32, i32) {
    %c0_i32 = arith.constant 0 : i32
    %c0_i32_0 = arith.constant 0 : i32
    %c0_i32_1 = arith.constant 0 : i32
    return %c0_i32, %c0_i32_0 : i32, i32
  }
  func.func @transform_10(%arg0: i32) -> (i32, i32) {
    %c0_i32 = arith.constant 0 : i32
    %c0_i32_0 = arith.constant 0 : i32
    %c0_i32_1 = arith.constant 0 : i32
    return %c0_i32, %c0_i32_0 : i32, i32
  }
}

</mosaic_0001>

<llo_original>
// kernel: tpu_custom_call.1
$region0: #{tpu_custom_call.1}
  #allocation0 [shape = 'u32[]', space=smem, size = 0x4, offset = 0x4, fixed_abs, tag = 'smem constant byte address 0x4 - core index']
  #allocation1 [shape = 'u32[144,128]{1,0:T(1,128)}', space=vmem, size = 0x12000, scoped, tag = 'internal scratch']
  %s0 = inlined_call_operand.hbm [shape: f32[8,8,128], index: 0, kind: input, shape index: {}]
  %s1 = inlined_call_operand.hbm [shape: f32[1,8,128], index: 1, kind: input, shape index: {}]
  %s2 = inlined_call_operand.hbm [shape: f32[8,32], index: 2, kind: input, shape index: {}]
  %s3 = inlined_call_operand.hbm [shape: f32[8,32], index: 3, kind: input, shape index: {}]
  %s4 = inlined_call_operand.hbm [shape: bf16[128,128], index: 4, kind: input, shape index: {}]
  %s5 = inlined_call_operand.hbm [shape: bf16[32,128], index: 5, kind: input, shape index: {}]
  %s6 = inlined_call_operand.hbm [shape: bf16[32,128], index: 6, kind: input, shape index: {}]
  %s7 = inlined_call_operand.vmem [shape: f32[8,128], index: 7, kind: input, shape index: {}]
  %s8 = inlined_call_operand.hbm [shape: f32[1,8,128], index: 8, kind: output, shape index: {0}]
  %s9 = inlined_call_operand.hbm [shape: f32[8,32], index: 9, kind: output, shape index: {1}]
  %s10 = inlined_call_operand.hbm [shape: f32[8,32], index: 10, kind: output, shape index: {2}]
  %11 = xla_tuple %s8, %s9, %s10
  %s12 = sld [smem:[#allocation0]]
  $region90: #{tpu_custom_call.1} parent=0
    _
  %s14 = ssub.s32 1, %s12
  %s15 = scalar_select 0, %s14, %s12
  $region1: #{tpu_custom_call.1} parent=0
    #allocation2 [shape = 'u8[32768]{0}', space=vmem, size = 0x8000, scoped, tag = 'input window, operand 0, single buffered']
    #allocation3 [shape = 's32[1]{0}', space=sflag, size = 0x4, scoped, tag = 'scoped memory for tpu_custom_call.1']
    #allocation4 [shape = 's32[1]{0}', space=sflag, size = 0x4, scoped, tag = 'scoped memory for tpu_custom_call.1']
    #allocation5 [shape = 'u8[4096]{0}', space=vmem, size = 0x1000, scoped, tag = 'input window, operand 1, single buffered']
    #allocation6 [shape = 's32[1]{0}', space=sflag, size = 0x4, scoped, tag = 'scoped memory for tpu_custom_call.1']
    #allocation7 [shape = 'u8[4096]{0}', space=vmem, size = 0x1000, scoped, tag = 'input window, operand 2, single buffered']
    #allocation8 [shape = 'u8[4096]{0}', space=vmem, size = 0x1000, scoped, tag = 'input window, operand 3, single buffered']
    #allocation9 [shape = 's32[1]{0}', space=sflag, size = 0x4, scoped, tag = 'scoped memory for tpu_custom_call.1']
    #allocation10 [shape = 'u8[32768]{0}', space=vmem, size = 0x8000, scoped, tag = 'input window, operand 4, single buffered']
    #allocation11 [shape = 'u8[8192]{0}', space=vmem, size = 0x2000, scoped, tag = 'input window, operand 5, single buffered']
    #allocation12 [shape = 's32[1]{0}', space=sflag, size = 0x4, scoped, tag = 'scoped memory for tpu_custom_call.1']
    #allocation13 [shape = 'u8[8192]{0}', space=vmem, size = 0x2000, scoped, tag = 'input window, operand 6, single buffered']
    #allocation14 [shape = 'u8[4096]{0}', space=vmem, size = 0x1000, scoped, tag = 'output window, operand 0, single buffered']
    #allocation15 [shape = 'u8[4096]{0}', space=vmem, size = 0x1000, scoped, tag = 'output window, operand 1, single buffered']
    #allocation16 [shape = 's32[1]{0}', space=sflag, size = 0x4, scoped, tag = 'scoped memory for tpu_custom_call.1']
    #allocation17 [shape = 'u8[4096]{0}', space=vmem, size = 0x1000, scoped, tag = 'output window, operand 2, single buffered']
    %16 = vsyncpa [#allocation3], 0
    %17 = vsyncpa [#allocation6], 0
    %18 = vsyncpa [#allocation9], 0
    %19 = vsyncpa [#allocation12], 0
    %20 = vsyncpa [#allocation4], 0
    %21 = vsyncpa [#allocation16], 0
    // Predicated region
    $region2: #{tpu_custom_call.1} parent=1 // pred_check
      _
    $region3: #{tpu_custom_call.1} parent=1 // pred_check_branch
      %23 = sbr.rel (0) target = $region5
    $region4: #{tpu_custom_call.1} parent=1 // pred_region
      %s25 = ssub.s32 1024, 1024
      %26 = vsyncadd [#allocation3], %s25
      %s27 = sshll.u32 [#allocation2], 4
      %s28 = int_to_ptr.vmem [resolvable:$true] %s27
      %33 = dma.hbm_to_vmem [thread:$0]  %s0, 1024, %s28, [#allocation3], 128, 128, 8
    $region5: #{tpu_custom_call.1} parent=1 // pred_fallthru
      _
    // Predicated region
    $region6: #{tpu_custom_call.1} parent=1 // pred_check
      _
    $region7: #{tpu_custom_call.1} parent=1 // pred_check_branch
      %35 = sbr.rel (0) target = $region9
    $region8: #{tpu_custom_call.1} parent=1 // pred_region
      %s37 = ssub.s32 128, 128
      %38 = vsyncadd [#allocation6], %s37
      %s40 = sshll.u32 [#allocation5], 4
      %s41 = int_to_ptr.vmem [resolvable:$true] %s40
      %43 = dma.hbm_to_vmem [thread:$0]  %s1, 128, %s41, [#allocation6]
    $region9: #{tpu_custom_call.1} parent=1 // pred_fallthru
      _
    // Predicated region
    $region10: #{tpu_custom_call.1} parent=1 // pred_check
      _
    $region11: #{tpu_custom_call.1} parent=1 // pred_check_branch
      %45 = sbr.rel (0) target = $region13
    $region12: #{tpu_custom_call.1} parent=1 // pred_region
      %s47 = ssub.s32 128, 128
      %48 = vsyncadd [#allocation6], %s47
      %s50 = sshll.u32 [#allocation7], 4
      %s51 = int_to_ptr.vmem [resolvable:$true] %s50
      %53 = dma.hbm_to_vmem [thread:$0]  %s2, 128, %s51, [#allocation6]
    $region13: #{tpu_custom_call.1} parent=1 // pred_fallthru
      _
    // Predicated region
    $region14: #{tpu_custom_call.1} parent=1 // pred_check
      _
    $region15: #{tpu_custom_call.1} parent=1 // pred_check_branch
      %55 = sbr.rel (0) target = $region17
    $region16: #{tpu_custom_call.1} parent=1 // pred_region
      %s57 = ssub.s32 128, 128
      %58 = vsyncadd [#allocation9], %s57
      %s60 = sshll.u32 [#allocation8], 4
      %s61 = int_to_ptr.vmem [resolvable:$true] %s60
      %63 = dma.hbm_to_vmem [thread:$0]  %s3, 128, %s61, [#allocation9]
    $region17: #{tpu_custom_call.1} parent=1 // pred_fallthru
      _
    // Predicated region
    $region18: #{tpu_custom_call.1} parent=1 // pred_check
      _
    $region19: #{tpu_custom_call.1} parent=1 // pred_check_branch
      %65 = sbr.rel (0) target = $region21
    $region20: #{tpu_custom_call.1} parent=1 // pred_region
      %s67 = ssub.s32 1024, 1024
      %68 = vsyncadd [#allocation9], %s67
      %s69 = sshll.u32 [#allocation10], 4
      %s70 = int_to_ptr.vmem [resolvable:$true] %s69
      %75 = dma.hbm_to_vmem [thread:$0]  %s4, 1024, %s70, [#allocation9], 64, 64, 4
    $region21: #{tpu_custom_call.1} parent=1 // pred_fallthru
      _
    // Predicated region
    $region22: #{tpu_custom_call.1} parent=1 // pred_check
      _
    $region23: #{tpu_custom_call.1} parent=1 // pred_check_branch
      %77 = sbr.rel (0) target = $region25
    $region24: #{tpu_custom_call.1} parent=1 // pred_region
      %s79 = ssub.s32 256, 256
      %80 = vsyncadd [#allocation12], %s79
      %s81 = sshll.u32 [#allocation11], 4
      %s82 = int_to_ptr.vmem [resolvable:$true] %s81
      %87 = dma.hbm_to_vmem [thread:$0]  %s5, 256, %s82, [#allocation12], 64, 64, 4
    $region25: #{tpu_custom_call.1} parent=1 // pred_fallthru
      _
    // Predicated region
    $region26: #{tpu_custom_call.1} parent=1 // pred_check
      _
    $region27: #{tpu_custom_call.1} parent=1 // pred_check_branch
      %89 = sbr.rel (0) target = $region29
    $region28: #{tpu_custom_call.1} parent=1 // pred_region
      %s91 = ssub.s32 256, 256
      %92 = vsyncadd [#allocation12], %s91
      %s93 = sshll.u32 [#allocation13], 4
      %s94 = int_to_ptr.vmem [resolvable:$true] %s93
      %99 = dma.hbm_to_vmem [thread:$0]  %s6, 256, %s94, [#allocation12], 64, 64, 4
    $region29: #{tpu_custom_call.1} parent=1 // pred_fallthru
      _
    // Predicated region
    $region30: #{tpu_custom_call.1} parent=1 // pred_check
      _
    $region31: #{tpu_custom_call.1} parent=1 // pred_check_branch
      %101 = sbr.rel (0) target = $region33
    $region32: #{tpu_custom_call.1} parent=1 // pred_region
      _
    $region33: #{tpu_custom_call.1} parent=1 // pred_fallthru
      _
    // Predicated region
    $region34: #{tpu_custom_call.1} parent=1 // pred_check
      _
    $region35: #{tpu_custom_call.1} parent=1 // pred_check_branch
      %103 = sbr.rel (0) target = $region37
    $region36: #{tpu_custom_call.1} parent=1 // pred_region
      %104 = dma.done [#allocation3], 1024
    $region37: #{tpu_custom_call.1} parent=1 // pred_fallthru
      _
    // Predicated region
    $region38: #{tpu_custom_call.1} parent=1 // pred_check
      _
    $region39: #{tpu_custom_call.1} parent=1 // pred_check_branch
      %106 = sbr.rel (0) target = $region41
    $region40: #{tpu_custom_call.1} parent=1 // pred_region
      %107 = dma.done [#allocation6], 128
    $region41: #{tpu_custom_call.1} parent=1 // pred_fallthru
      _
    // Predicated region
    $region42: #{tpu_custom_call.1} parent=1 // pred_check
      _
    $region43: #{tpu_custom_call.1} parent=1 // pred_check_branch
      %109 = sbr.rel (0) target = $region45
    $region44: #{tpu_custom_call.1} parent=1 // pred_region
      %110 = dma.done [#allocation6], 128
    $region45: #{tpu_custom_call.1} parent=1 // pred_fallthru
      _
    // Predicated region
    $region46: #{tpu_custom_call.1} parent=1 // pred_check
      _
    $region47: #{tpu_custom_call.1} parent=1 // pred_check_branch
      %112 = sbr.rel (0) target = $region49
    $region48: #{tpu_custom_call.1} parent=1 // pred_region
      %113 = dma.done [#allocation9], 128
    $region49: #{tpu_custom_call.1} parent=1 // pred_fallthru
      _
    // Predicated region
    $region50: #{tpu_custom_call.1} parent=1 // pred_check
      _
    $region51: #{tpu_custom_call.1} parent=1 // pred_check_branch
      %115 = sbr.rel (0) target = $region53
    $region52: #{tpu_custom_call.1} parent=1 // pred_region
      %116 = dma.done [#allocation9], 1024
    $region53: #{tpu_custom_call.1} parent=1 // pred_fallthru
      _
    // Predicated region
    $region54: #{tpu_custom_call.1} parent=1 // pred_check
      _
    $region55: #{tpu_custom_call.1} parent=1 // pred_check_branch
      %118 = sbr.rel (0) target = $region57
    $region56: #{tpu_custom_call.1} parent=1 // pred_region
      %119 = dma.done [#allocation12], 256
    $region57: #{tpu_custom_call.1} parent=1 // pred_fallthru
      _
    // Predicated region
    $region58: #{tpu_custom_call.1} parent=1 // pred_check
      _
    $region59: #{tpu_custom_call.1} parent=1 // pred_check_branch
      %121 = sbr.rel (0) target = $region61
    $region60: #{tpu_custom_call.1} parent=1 // pred_region
      %122 = dma.done [#allocation12], 256
    $region61: #{tpu_custom_call.1} parent=1 // pred_fallthru
      _
    %p124 = scmp.eq.s32.totalorder 0, 0
    // Predicated region
    $region62: #{tpu_custom_call.1} parent=1 // pred_check
      %p125 = pneg %p124
    $region63: #{tpu_custom_call.1} parent=1 // pred_check_branch
      %127 = sbr.rel (%p125) target = $region65
    $region64: #{tpu_custom_call.1} parent=1 // pred_region
      %v128 = vld [vmem:[#allocation7] sm:$0xff]
      %vm129 = vcmask 261120
      %130 = vst.msk [vmem:[#allocation15] sm:$0xff] %vm129, %v128
      %v131 = vld [vmem:[#allocation8] sm:$0xff]
      %132 = vst.msk [vmem:[#allocation17] sm:$0xff] %vm129, %v131
    $region65: #{tpu_custom_call.1} parent=1 // pred_fallthru
      _
    %v133 = vld [vmem:[#allocation2] sm:$0xff]
    %v134 = vld [vmem:[#allocation2 + $0x8] sm:$0xff]
    %v135 = vld [vmem:[#allocation2 + $0x10] sm:$0xff]
    %v136 = vld [vmem:[#allocation2 + $0x18] sm:$0xff]
    %v137 = vld [vmem:[#allocation2 + $0x20] sm:$0xff]
    %v138 = vld [vmem:[#allocation2 + $0x28] sm:$0xff]
    %v139 = vld [vmem:[#allocation2 + $0x30] sm:$0xff]
    %v140 = vld [vmem:[#allocation2 + $0x38] sm:$0xff]
    %v141 = vld [vmem:[#allocation15] sm:$0xff]
    %v142 = vld [vmem:[#allocation17] sm:$0xff]
    %v143 = vld [vmem:[%s7 + $0x2] sm:$0x1]
    %v144 = vld [vmem:[%s7 + $0x3] sm:$0x1]
    %v145 = vld [vmem:[%s7 + $0x4] sm:$0x1]
    %v146 = vlaneseq
    %v147 = vshrl.u32 %v146, 7
    %v148 = vsub.s32 0, %v147
    %v149 = vrot.slane %v143, %v148
    %v150 = vmul.f32 %v133, %v149
    %v151 = vmul.f32 %v134, %v149
    %v152 = vmul.f32 %v135, %v149
    %v153 = vmul.f32 %v136, %v149
    %v154 = vmul.f32 %v137, %v149
    %v155 = vmul.f32 %v138, %v149
    %v156 = vmul.f32 %v139, %v149
    %v157 = vmul.f32 %v140, %v149
    %158 = vadd.xlane.f32.xlu0 %v150
    %v159 = vpop.xlane.xlu0 %158
    %160 = vadd.xlane.f32.xlu0 %v151
    %v161 = vpop.xlane.xlu0 %160
    %162 = vadd.xlane.f32.xlu0 %v152
    %v163 = vpop.xlane.xlu0 %162
    %164 = vadd.xlane.f32.xlu0 %v153
    %v165 = vpop.xlane.xlu0 %164
    %166 = vadd.xlane.f32.xlu0 %v154
    %v167 = vpop.xlane.xlu0 %166
    %168 = vadd.xlane.f32.xlu0 %v155
    %v169 = vpop.xlane.xlu0 %168
    %170 = vadd.xlane.f32.xlu0 %v156
    %v171 = vpop.xlane.xlu0 %170
    %172 = vadd.xlane.f32.xlu0 %v157
    %v173 = vpop.xlane.xlu0 %172
    %v174 = vlaneseq
    %v175 = vshrl.u32 %v174, 7
    %v176 = vsub.s32 0, %v175
    %v177 = vrot.slane %v144, %v176
    %v178 = vmul.f32 %v141, %v177
    %vm179 = vcmask 261120
    %v180 = vsel %vm179, %v178, 0.0
    %181 = vadd.xlane.f32.xlu0 %v180
    %v182 = vpop.xlane.xlu0 %181
    %v183 = vlaneseq
    %v184 = vshrl.u32 %v183, 7
    %v185 = vsub.s32 0, %v184
    %v186 = vrot.slane %v145, %v185
    %v187 = vadd.f32 %v182, %v186
    %189 = vset.pattern.permute.xlu0 0
    %190 = vperm.xlu0 %189, %v187
    %v191 = vpop.permute.xlu0 %190
    %v192 = vlaneseq
    %v193 = vshrl.u32 %v192, 7
    %v194 = vsub.s32 0, %v193
    %v195 = vrot.slane %v191, %v194
    %v196 = vlaneseq
    %v197 = vshrl.u32 %v196, 7
    %v198 = vsub.s32 1, %v197
    %v199 = vrot.slane %v191, %v198
    %v200 = vlaneseq
    %v201 = vshrl.u32 %v200, 7
    %v202 = vsub.s32 2, %v201
    %v203 = vrot.slane %v191, %v202
    %v204 = vlaneseq
    %v205 = vshrl.u32 %v204, 7
    %v206 = vsub.s32 3, %v205
    %v207 = vrot.slane %v191, %v206
    %v208 = vlaneseq
    %v209 = vshrl.u32 %v208, 7
    %v210 = vsub.s32 4, %v209
    %v211 = vrot.slane %v191, %v210
    %v212 = vlaneseq
    %v213 = vshrl.u32 %v212, 7
    %v214 = vsub.s32 5, %v213
    %v215 = vrot.slane %v191, %v214
    %v216 = vlaneseq
    %v217 = vshrl.u32 %v216, 7
    %v218 = vsub.s32 6, %v217
    %v219 = vrot.slane %v191, %v218
    %v220 = vlaneseq
    %v221 = vshrl.u32 %v220, 7
    %v222 = vsub.s32 7, %v221
    %v223 = vrot.slane %v191, %v222
    %v232 = vadd.f32 %v159, %v195
    %v233 = vadd.f32 %v161, %v199
    %v234 = vadd.f32 %v163, %v203
    %v235 = vadd.f32 %v165, %v207
    %v236 = vadd.f32 %v167, %v211
    %v237 = vadd.f32 %v169, %v215
    %v238 = vadd.f32 %v171, %v219
    %v239 = vadd.f32 %v173, %v223
    %v240 = vmax.f32 %v232, 0.0
    %v241 = vmax.f32 %v233, 0.0
    %v242 = vmax.f32 %v234, 0.0
    %v243 = vmax.f32 %v235, 0.0
    %v244 = vmax.f32 %v236, 0.0
    %v245 = vmax.f32 %v237, 0.0
    %v246 = vmax.f32 %v238, 0.0
    %v247 = vmax.f32 %v239, 0.0
    %256 = vset.pattern.permute.xlu0 0
    %257 = vperm.xlu0 %256, %v240
    %v258 = vpop.permute.xlu0 %257
    %259 = vset.pattern.permute.xlu0 0
    %260 = vperm.xlu0 %259, %v241
    %v261 = vpop.permute.xlu0 %260
    %262 = vset.pattern.permute.xlu0 0
    %263 = vperm.xlu0 %262, %v242
    %v264 = vpop.permute.xlu0 %263
    %265 = vset.pattern.permute.xlu0 0
    %266 = vperm.xlu0 %265, %v243
    %v267 = vpop.permute.xlu0 %266
    %268 = vset.pattern.permute.xlu0 0
    %269 = vperm.xlu0 %268, %v244
    %v270 = vpop.permute.xlu0 %269
    %271 = vset.pattern.permute.xlu0 0
    %272 = vperm.xlu0 %271, %v245
    %v273 = vpop.permute.xlu0 %272
    %274 = vset.pattern.permute.xlu0 0
    %275 = vperm.xlu0 %274, %v246
    %v276 = vpop.permute.xlu0 %275
    %277 = vset.pattern.permute.xlu0 0
    %278 = vperm.xlu0 %277, %v247
    %v279 = vpop.permute.xlu0 %278
    %v280 = vlaneseq
    %v281 = vand.u32 %v280, 127
    %v282 = vlaneseq
    %v283 = vshrl.u32 %v282, 7
    %v284 = vsub.s32 %v281, %v283
    %v285 = vrot.slane %v258, %v284
    %v286 = vlaneseq
    %v287 = vshrl.u32 %v286, 7
    %v288 = vsub.s32 %v281, %v287
    %v289 = vrot.slane %v261, %v288
    %v290 = vlaneseq
    %v291 = vshrl.u32 %v290, 7
    %v292 = vsub.s32 %v281, %v291
    %v293 = vrot.slane %v264, %v292
    %v294 = vlaneseq
    %v295 = vshrl.u32 %v294, 7
    %v296 = vsub.s32 %v281, %v295
    %v297 = vrot.slane %v267, %v296
    %v298 = vlaneseq
    %v299 = vshrl.u32 %v298, 7
    %v300 = vsub.s32 %v281, %v299
    %v301 = vrot.slane %v270, %v300
    %v302 = vlaneseq
    %v303 = vshrl.u32 %v302, 7
    %v304 = vsub.s32 %v281, %v303
    %v305 = vrot.slane %v273, %v304
    %v306 = vlaneseq
    %v307 = vshrl.u32 %v306, 7
    %v308 = vsub.s32 %v281, %v307
    %v309 = vrot.slane %v276, %v308
    %v310 = vlaneseq
    %v311 = vshrl.u32 %v310, 7
    %v312 = vsub.s32 %v281, %v311
    %v313 = vrot.slane %v279, %v312
    %vm314 = vcmask 1041409
    %v315 = vsel %vm314, %v289, %v285
    %vm316 = vcmask 1042434
    %v317 = vsel %vm316, %v293, %v315
    %vm318 = vcmask 1043459
    %v319 = vsel %vm318, %v297, %v317
    %vm320 = vcmask 1044484
    %v321 = vsel %vm320, %v301, %v319
    %vm322 = vcmask 1045509
    %v323 = vsel %vm322, %v305, %v321
    %vm324 = vcmask 1046534
    %v325 = vsel %vm324, %v309, %v323
    %vm326 = vcmask 1047559
    %v327 = vsel %vm326, %v313, %v325
    %vm329 = vcmask 64512
    %v330 = vsel %vm329, %v327, -inf
    %331 = vmax.xlane.f32.xlu0 %v330
    %v332 = vpop.xlane.xlu0 %331
    %v334 = vlaneseq
    %v335 = vshrl.u32 %v334, 7
    %v336 = vsub.s32 0, %v335
    %v337 = vrot.slane %v332, %v336
    %v338 = vlaneseq
    %v339 = vshrl.u32 %v338, 7
    %v340 = vsub.s32 1, %v339
    %v341 = vrot.slane %v332, %v340
    %v342 = vlaneseq
    %v343 = vshrl.u32 %v342, 7
    %v344 = vsub.s32 2, %v343
    %v345 = vrot.slane %v332, %v344
    %v346 = vlaneseq
    %v347 = vshrl.u32 %v346, 7
    %v348 = vsub.s32 3, %v347
    %v349 = vrot.slane %v332, %v348
    %v350 = vlaneseq
    %v351 = vshrl.u32 %v350, 7
    %v352 = vsub.s32 4, %v351
    %v353 = vrot.slane %v332, %v352
    %v354 = vlaneseq
    %v355 = vshrl.u32 %v354, 7
    %v356 = vsub.s32 5, %v355
    %v357 = vrot.slane %v332, %v356
    %v358 = vlaneseq
    %v359 = vshrl.u32 %v358, 7
    %v360 = vsub.s32 6, %v359
    %v361 = vrot.slane %v332, %v360
    %v362 = vlaneseq
    %v363 = vshrl.u32 %v362, 7
    %v364 = vsub.s32 7, %v363
    %v365 = vrot.slane %v332, %v364
    %v374 = vsub.f32 %v240, %v337
    %v375 = vsub.f32 %v241, %v341
    %v376 = vsub.f32 %v242, %v345
    %v377 = vsub.f32 %v243, %v349
    %v378 = vsub.f32 %v244, %v353
    %v379 = vsub.f32 %v245, %v357
    %v380 = vsub.f32 %v246, %v361
    %v381 = vsub.f32 %v247, %v365
    %v382 = vmul.f32 %v374, 1.442695
    %v383 = vpow.pop %v382
    %v384 = vmul.f32 %v375, 1.442695
    %v385 = vpow.pop %v384
    %v386 = vmul.f32 %v376, 1.442695
    %v387 = vpow.pop %v386
    %v388 = vmul.f32 %v377, 1.442695
    %v389 = vpow.pop %v388
    %v390 = vmul.f32 %v378, 1.442695
    %v391 = vpow.pop %v390
    %v392 = vmul.f32 %v379, 1.442695
    %v393 = vpow.pop %v392
    %v394 = vmul.f32 %v380, 1.442695
    %v395 = vpow.pop %v394
    %v396 = vmul.f32 %v381, 1.442695
    %v397 = vpow.pop %v396
    %406 = vset.pattern.permute.xlu0 0
    %407 = vperm.xlu0 %406, %v383
    %v408 = vpop.permute.xlu0 %407
    %409 = vset.pattern.permute.xlu0 0
    %410 = vperm.xlu0 %409, %v385
    %v411 = vpop.permute.xlu0 %410
    %412 = vset.pattern.permute.xlu0 0
    %413 = vperm.xlu0 %412, %v387
    %v414 = vpop.permute.xlu0 %413
    %415 = vset.pattern.permute.xlu0 0
    %416 = vperm.xlu0 %415, %v389
    %v417 = vpop.permute.xlu0 %416
    %418 = vset.pattern.permute.xlu0 0
    %419 = vperm.xlu0 %418, %v391
    %v420 = vpop.permute.xlu0 %419
    %421 = vset.pattern.permute.xlu0 0
    %422 = vperm.xlu0 %421, %v393
    %v423 = vpop.permute.xlu0 %422
    %424 = vset.pattern.permute.xlu0 0
    %425 = vperm.xlu0 %424, %v395
    %v426 = vpop.permute.xlu0 %425
    %427 = vset.pattern.permute.xlu0 0
    %428 = vperm.xlu0 %427, %v397
    %v429 = vpop.permute.xlu0 %428
    %v430 = vlaneseq
    %v431 = vshrl.u32 %v430, 7
    %v432 = vsub.s32 %v281, %v431
    %v433 = vrot.slane %v408, %v432
    %v434 = vlaneseq
    %v435 = vshrl.u32 %v434, 7
    %v436 = vsub.s32 %v281, %v435
    %v437 = vrot.slane %v411, %v436
    %v438 = vlaneseq
    %v439 = vshrl.u32 %v438, 7
    %v440 = vsub.s32 %v281, %v439
    %v441 = vrot.slane %v414, %v440
    %v442 = vlaneseq
    %v443 = vshrl.u32 %v442, 7
    %v444 = vsub.s32 %v281, %v443
    %v445 = vrot.slane %v417, %v444
    %v446 = vlaneseq
    %v447 = vshrl.u32 %v446, 7
    %v448 = vsub.s32 %v281, %v447
    %v449 = vrot.slane %v420, %v448
    %v450 = vlaneseq
    %v451 = vshrl.u32 %v450, 7
    %v452 = vsub.s32 %v281, %v451
    %v453 = vrot.slane %v423, %v452
    %v454 = vlaneseq
    %v455 = vshrl.u32 %v454, 7
    %v456 = vsub.s32 %v281, %v455
    %v457 = vrot.slane %v426, %v456
    %v458 = vlaneseq
    %v459 = vshrl.u32 %v458, 7
    %v460 = vsub.s32 %v281, %v459
    %v461 = vrot.slane %v429, %v460
    %v462 = vsel %vm314, %v437, %v433
    %v463 = vsel %vm316, %v441, %v462
    %v464 = vsel %vm318, %v445, %v463
    %v465 = vsel %vm320, %v449, %v464
    %v466 = vsel %vm322, %v453, %v465
    %v467 = vsel %vm324, %v457, %v466
    %v468 = vsel %vm326, %v461, %v467
    %v470 = vsel %vm329, %v468, 0.0
    %471 = vadd.xlane.f32.xlu0 %v470
    %v472 = vpop.xlane.xlu0 %471
    %v473 = vrcp.pop %v472
    %v475 = vlaneseq
    %v476 = vshrl.u32 %v475, 7
    %v477 = vsub.s32 0, %v476
    %v478 = vrot.slane %v473, %v477
    %v479 = vlaneseq
    %v480 = vshrl.u32 %v479, 7
    %v481 = vsub.s32 1, %v480
    %v482 = vrot.slane %v473, %v481
    %v483 = vlaneseq
    %v484 = vshrl.u32 %v483, 7
    %v485 = vsub.s32 2, %v484
    %v486 = vrot.slane %v473, %v485
    %v487 = vlaneseq
    %v488 = vshrl.u32 %v487, 7
    %v489 = vsub.s32 3, %v488
    %v490 = vrot.slane %v473, %v489
    %v491 = vlaneseq
    %v492 = vshrl.u32 %v491, 7
    %v493 = vsub.s32 4, %v492
    %v494 = vrot.slane %v473, %v493
    %v495 = vlaneseq
    %v496 = vshrl.u32 %v495, 7
    %v497 = vsub.s32 5, %v496
    %v498 = vrot.slane %v473, %v497
    %v499 = vlaneseq
    %v500 = vshrl.u32 %v499, 7
    %v501 = vsub.s32 6, %v500
    %v502 = vrot.slane %v473, %v501
    %v503 = vlaneseq
    %v504 = vshrl.u32 %v503, 7
    %v505 = vsub.s32 7, %v504
    %v506 = vrot.slane %v473, %v505
    %v515 = vmul.f32 %v383, %v478
    %v516 = vmul.f32 %v385, %v482
    %v517 = vmul.f32 %v387, %v486
    %v518 = vmul.f32 %v389, %v490
    %v519 = vmul.f32 %v391, %v494
    %v520 = vmul.f32 %v393, %v498
    %v521 = vmul.f32 %v395, %v502
    %v522 = vmul.f32 %v397, %v506
    %524 = vset.pattern.permute.xlu0 0
    %525 = vperm.xlu0 %524, %v515
    %v526 = vpop.permute.xlu0 %525
    %529 = vset.pattern.permute.xlu0 0
    %530 = vperm.xlu0 %529, %v516
    %v531 = vpop.permute.xlu0 %530
    %534 = vset.pattern.permute.xlu0 0
    %535 = vperm.xlu0 %534, %v517
    %v536 = vpop.permute.xlu0 %535
    %539 = vset.pattern.permute.xlu0 0
    %540 = vperm.xlu0 %539, %v518
    %v541 = vpop.permute.xlu0 %540
    %544 = vset.pattern.permute.xlu0 0
    %545 = vperm.xlu0 %544, %v519
    %v546 = vpop.permute.xlu0 %545
    %549 = vset.pattern.permute.xlu0 0
    %550 = vperm.xlu0 %549, %v520
    %v551 = vpop.permute.xlu0 %550
    %554 = vset.pattern.permute.xlu0 0
    %555 = vperm.xlu0 %554, %v521
    %v556 = vpop.permute.xlu0 %555
    %559 = vset.pattern.permute.xlu0 0
    %560 = vperm.xlu0 %559, %v522
    %v561 = vpop.permute.xlu0 %560
    %v563 = vmul.f32 %v526, %v133
    %v564 = vmul.f32 %v531, %v134
    %v565 = vmul.f32 %v536, %v135
    %v566 = vmul.f32 %v541, %v136
    %v567 = vmul.f32 %v546, %v137
    %v568 = vmul.f32 %v551, %v138
    %v569 = vmul.f32 %v556, %v139
    %v570 = vmul.f32 %v561, %v140
    %v571 = vrot.slane %v563, 4
    %v572 = vadd.f32 %v563, %v571
    %v573 = vrot.slane %v572, 2
    %v574 = vadd.f32 %v572, %v573
    %v575 = vrot.slane %v574, 1
    %v576 = vadd.f32 %v574, %v575
    %v577 = vrot.slane %v564, 4
    %v578 = vadd.f32 %v564, %v577
    %v579 = vrot.slane %v578, 2
    %v580 = vadd.f32 %v578, %v579
    %v581 = vrot.slane %v580, 1
    %v582 = vadd.f32 %v580, %v581
    %v583 = vrot.slane %v565, 4
    %v584 = vadd.f32 %v565, %v583
    %v585 = vrot.slane %v584, 2
    %v586 = vadd.f32 %v584, %v585
    %v587 = vrot.slane %v586, 1
    %v588 = vadd.f32 %v586, %v587
    %v589 = vrot.slane %v566, 4
    %v590 = vadd.f32 %v566, %v589
    %v591 = vrot.slane %v590, 2
    %v592 = vadd.f32 %v590, %v591
    %v593 = vrot.slane %v592, 1
    %v594 = vadd.f32 %v592, %v593
    %v595 = vrot.slane %v567, 4
    %v596 = vadd.f32 %v567, %v595
    %v597 = vrot.slane %v596, 2
    %v598 = vadd.f32 %v596, %v597
    %v599 = vrot.slane %v598, 1
    %v600 = vadd.f32 %v598, %v599
    %v601 = vrot.slane %v568, 4
    %v602 = vadd.f32 %v568, %v601
    %v603 = vrot.slane %v602, 2
    %v604 = vadd.f32 %v602, %v603
    %v605 = vrot.slane %v604, 1
    %v606 = vadd.f32 %v604, %v605
    %v607 = vrot.slane %v569, 4
    %v608 = vadd.f32 %v569, %v607
    %v609 = vrot.slane %v608, 2
    %v610 = vadd.f32 %v608, %v609
    %v611 = vrot.slane %v610, 1
    %v612 = vadd.f32 %v610, %v611
    %v613 = vrot.slane %v570, 4
    %v614 = vadd.f32 %v570, %v613
    %v615 = vrot.slane %v614, 2
    %v616 = vadd.f32 %v614, %v615
    %v617 = vrot.slane %v616, 1
    %v618 = vadd.f32 %v616, %v617
    %v619 = vld [vmem:[#allocation5] sm:$0xff]
    %v621 = vrot.slane %v619, 1
    %v622 = vrot.slane %v619, 2
    %v623 = vrot.slane %v619, 3
    %v624 = vrot.slane %v619, 4
    %v625 = vrot.slane %v619, 5
    %v626 = vrot.slane %v619, 6
    %v627 = vrot.slane %v619, 7
    %v636 = vadd.f32 %v576, %v619
    %v637 = vadd.f32 %v582, %v621
    %v638 = vadd.f32 %v588, %v622
    %v639 = vadd.f32 %v594, %v623
    %v640 = vadd.f32 %v600, %v624
    %v641 = vadd.f32 %v606, %v625
    %v642 = vadd.f32 %v612, %v626
    %v643 = vadd.f32 %v618, %v627
    %v644 = vpack.c.bf16 %v636, %v636
    %v645 = vpack.c.bf16 %v637, %v637
    %v646 = vpack.c.bf16 %v638, %v638
    %v647 = vpack.c.bf16 %v639, %v639
    %v648 = vpack.c.bf16 %v640, %v640
    %v649 = vpack.c.bf16 %v641, %v641
    %v650 = vpack.c.bf16 %v642, %v642
    %v651 = vpack.c.bf16 %v643, %v643
    %v652 = vld [vmem:[#allocation10] sm:$0xf]
    %v653 = vld [vmem:[#allocation10 + $0x4] sm:$0xf]
    %v654 = vld [vmem:[#allocation10 + $0x8] sm:$0xf]
    %v655 = vld [vmem:[#allocation10 + $0xc] sm:$0xf]
    %v656 = vld [vmem:[#allocation10 + $0x10] sm:$0xf]
    %v657 = vld [vmem:[#allocation10 + $0x14] sm:$0xf]
    %v658 = vld [vmem:[#allocation10 + $0x18] sm:$0xf]
    %v659 = vld [vmem:[#allocation10 + $0x1c] sm:$0xf]
    %v660 = vld [vmem:[#allocation10 + $0x20] sm:$0xf]
    %v661 = vld [vmem:[#allocation10 + $0x24] sm:$0xf]
    %v662 = vld [vmem:[#allocation10 + $0x28] sm:$0xf]
    %v663 = vld [vmem:[#allocation10 + $0x2c] sm:$0xf]
    %v664 = vld [vmem:[#allocation10 + $0x30] sm:$0xf]
    %v665 = vld [vmem:[#allocation10 + $0x34] sm:$0xf]
    %v666 = vld [vmem:[#allocation10 + $0x38] sm:$0xf]
    %v667 = vld [vmem:[#allocation10 + $0x3c] sm:$0xf]
    %v668 = vpack.c.bf16 %v141, %v141
    %v669 = vld [vmem:[#allocation11] sm:$0xf]
    %v670 = vld [vmem:[#allocation11 + $0x4] sm:$0xf]
    %v671 = vld [vmem:[#allocation11 + $0x8] sm:$0xf]
    %v672 = vld [vmem:[#allocation11 + $0xc] sm:$0xf]
    %v677 = vunpack.c.l.b16 %v669
    %v678 = vunpack.c.l.b16 %v670
    %v679 = vunpack.c.l.b16 %v671
    %v680 = vunpack.c.l.b16 %v672
    %v681 = vpack.c.b16 %v678, %v677
    %v682 = vpack.c.b16 %v680, %v679
    %v686 = vsel %vm179, %v668, 0
    %688 = vmatprep.subr.bf16.mxu0 0
    %689 = vmatpush1.bf16.msra.mxu0 0
    %690 = vmatprep.subr.bf16.mxu0 0
    %691 = vmatpush1.bf16.msra.mxu0 0
    %692 = vmatprep.subr.bf16.mxu0 0
    %693 = vmatpush1.bf16.msra.mxu0 0
    %694 = vmatprep.subr.bf16.mxu0 0
    %695 = vmatpush1.bf16.msra.mxu0 0
    %696 = vmatprep.subr.bf16.mxu0 0
    %697 = vmatpush1.bf16.msra.mxu0 0
    %698 = vmatprep.subr.bf16.mxu0 0
    %699 = vmatpush1.bf16.msra.mxu0 0
    %700 = vmatprep.subr.bf16.mxu0 0
    %701 = vmatpush1.bf16.msra.mxu0 %v682
    %702 = vmatprep.subr.bf16.mxu0 0
    %703 = vmatpush1.bf16.msra.mxu0 %v681
    %704 = vmatprep.subr.bf16.mxu0 0
    %705 = vmatpush2.bf16.msra.mxu0 0
    %706 = vmatprep.subr.bf16.mxu0 0
    %707 = vmatpush2.bf16.msra.mxu0 0
    %708 = vmatprep.subr.bf16.mxu0 0
    %709 = vmatpush2.bf16.msra.mxu0 0
    %710 = vmatprep.subr.bf16.mxu0 0
    %711 = vmatpush2.bf16.msra.mxu0 0
    %712 = vmatprep.subr.bf16.mxu0 0
    %713 = vmatpush2.bf16.msra.mxu0 0
    %714 = vmatprep.subr.bf16.mxu0 0
    %715 = vmatpush2.bf16.msra.mxu0 0
    %716 = vmatprep.subr.bf16.mxu0 0
    %717 = vmatpush2.bf16.msra.mxu0 0
    %718 = vmatprep.subr.bf16.mxu0 0
    %719 = vmatpush2.bf16.msra.mxu0 0
    %720 = vmatprep.mubr.bf16.mxu0 0
    %721 = vmatmul.mubr.bf16.gmra.mxu0 %v686
    %v722 = vpop.f32.mrf.mxu0
    %v723 = vadd.f32 0.0, %v722
    %v724 = vpop.f32.mrf.mxu0
    %v725 = vpop.f32.mrf.mxu0
    %v726 = vpop.f32.mrf.mxu0
    %727 = vdwg.mxu0
    %v736 = vunpack.c.l.b16 %v644
    %v737 = vunpack.c.l.b16 %v645
    %v738 = vunpack.c.l.b16 %v646
    %v739 = vunpack.c.l.b16 %v647
    %v740 = vunpack.c.l.b16 %v648
    %v741 = vunpack.c.l.b16 %v649
    %v742 = vunpack.c.l.b16 %v650
    %v743 = vunpack.c.l.b16 %v651
    %v744 = vrot.slane %v737, 7
    %v745 = vsel %vm314, %v744, %v736
    %v746 = vrot.slane %v738, 6
    %v747 = vsel %vm316, %v746, %v745
    %v748 = vrot.slane %v739, 5
    %v749 = vsel %vm318, %v748, %v747
    %v750 = vrot.slane %v740, 4
    %v751 = vsel %vm320, %v750, %v749
    %v752 = vrot.slane %v741, 3
    %v753 = vsel %vm322, %v752, %v751
    %v754 = vrot.slane %v742, 2
    %v755 = vsel %vm324, %v754, %v753
    %v756 = vrot.slane %v743, 1
    %v757 = vsel %vm326, %v756, %v755
    %v758 = vpack.c.b16 %v757, %v757
    %v776 = vunpack.c.l.b16 %v652
    %v777 = vunpack.c.l.b16 %v653
    %v778 = vunpack.c.l.b16 %v654
    %v779 = vunpack.c.l.b16 %v655
    %v780 = vunpack.c.l.b16 %v656
    %v781 = vunpack.c.l.b16 %v657
    %v782 = vunpack.c.l.b16 %v658
    %v783 = vunpack.c.l.b16 %v659
    %v784 = vunpack.c.l.b16 %v660
    %v785 = vunpack.c.l.b16 %v661
    %v786 = vunpack.c.l.b16 %v662
    %v787 = vunpack.c.l.b16 %v663
    %v788 = vunpack.c.l.b16 %v664
    %v789 = vunpack.c.l.b16 %v665
    %v790 = vunpack.c.l.b16 %v666
    %v791 = vunpack.c.l.b16 %v667
    %v792 = vpack.c.b16 %v777, %v776
    %v793 = vpack.c.b16 %v779, %v778
    %v794 = vpack.c.b16 %v781, %v780
    %v795 = vpack.c.b16 %v783, %v782
    %v796 = vpack.c.b16 %v785, %v784
    %v797 = vpack.c.b16 %v787, %v786
    %v798 = vpack.c.b16 %v789, %v788
    %v799 = vpack.c.b16 %v791, %v790
    %808 = vmatprep.subr.bf16.mxu0 0
    %809 = vmatpush1.bf16.msra.mxu0 %v799
    %810 = vmatprep.subr.bf16.mxu0 0
    %811 = vmatpush1.bf16.msra.mxu0 %v798
    %812 = vmatprep.subr.bf16.mxu0 0
    %813 = vmatpush1.bf16.msra.mxu0 %v797
    %814 = vmatprep.subr.bf16.mxu0 0
    %815 = vmatpush1.bf16.msra.mxu0 %v796
    %816 = vmatprep.subr.bf16.mxu0 0
    %817 = vmatpush1.bf16.msra.mxu0 %v795
    %818 = vmatprep.subr.bf16.mxu0 0
    %819 = vmatpush1.bf16.msra.mxu0 %v794
    %820 = vmatprep.subr.bf16.mxu0 0
    %821 = vmatpush1.bf16.msra.mxu0 %v793
    %822 = vmatprep.subr.bf16.mxu0 0
    %823 = vmatpush1.bf16.msra.mxu0 %v792
    %824 = vmatprep.subr.bf16.mxu0 0
    %825 = vmatpush2.bf16.msra.mxu0 0
    %826 = vmatprep.subr.bf16.mxu0 0
    %827 = vmatpush2.bf16.msra.mxu0 0
    %828 = vmatprep.subr.bf16.mxu0 0
    %829 = vmatpush2.bf16.msra.mxu0 0
    %830 = vmatprep.subr.bf16.mxu0 0
    %831 = vmatpush2.bf16.msra.mxu0 0
    %832 = vmatprep.subr.bf16.mxu0 0
    %833 = vmatpush2.bf16.msra.mxu0 0
    %834 = vmatprep.subr.bf16.mxu0 0
    %835 = vmatpush2.bf16.msra.mxu0 0
    %836 = vmatprep.subr.bf16.mxu0 0
    %837 = vmatpush2.bf16.msra.mxu0 0
    %838 = vmatprep.subr.bf16.mxu0 0
    %839 = vmatpush2.bf16.msra.mxu0 0
    %840 = vmatprep.mubr.bf16.mxu0 0
    %841 = vmatmul.mubr.bf16.gmra.mxu0 %v758
    %v842 = vpop.f32.mrf.mxu0
    %v843 = vadd.f32 %v723, %v842
    %v844 = vpop.f32.mrf.mxu0
    %v845 = vpop.f32.mrf.mxu0
    %v846 = vpop.f32.mrf.mxu0
    %847 = vdwg.mxu0
    %v848 = vld [vmem:[%s7] sm:$0x1]
    %v849 = vlaneseq
    %v850 = vshrl.u32 %v849, 7
    %v851 = vsub.s32 0, %v850
    %v852 = vrot.slane %v848, %v851
    %v853 = vadd.f32 %v843, %v852
    %v854 = vxor.u32 %v853, 2147483648
    %v855 = vmul.f32 %v854, 1.442695
    %v856 = vpow.pop %v855
    %v857 = vadd.f32 %v856, 1.0
    %v858 = vrcp.pop %v857
    %v859 = vmul.f32 1.0, %v858
    %v860 = vtanh.pop %v853
    %862 = vrot.lane.b32.xlu0 %v142, 32
    %v863 = vpop.permute.xlu0 %862
    %v865 = vmul.f32 %v859, %v863
    %867 = vrot.lane.b32.xlu0 %v860, 64
    %v868 = vpop.permute.xlu0 %867
    %v870 = vmul.f32 %v859, %v868
    %872 = vrot.lane.b32.xlu0 %v870, 32
    %v873 = vpop.permute.xlu0 %872
    %v875 = vadd.f32 %v865, %v873
    %v876 = vtanh.pop %v875
    %878 = vrot.lane.b32.xlu0 %v876, 64
    %v879 = vpop.permute.xlu0 %878
    %v881 = vmul.f32 %v859, %v879
    %883 = vrot.lane.b32.xlu0 %v875, 96
    %v884 = vpop.permute.xlu0 %883
    %886 = vst.msk [vmem:[#allocation17] sm:$0xff] %vm179, %v884
    %888 = vrot.lane.b32.xlu0 %v881, 32
    %v889 = vpop.permute.xlu0 %888
    %891 = vst.msk [vmem:[#allocation15] sm:$0xff] %vm179, %v889
    %v892 = vpack.c.bf16 %v881, %v881
    %v893 = vld [vmem:[#allocation13] sm:$0xf]
    %v894 = vld [vmem:[#allocation13 + $0x4] sm:$0xf]
    %v895 = vld [vmem:[#allocation13 + $0x8] sm:$0xf]
    %v896 = vld [vmem:[#allocation13 + $0xc] sm:$0xf]
    %v897 = vld [vmem:[%s7 + $0x1] sm:$0x1]
    %v898 = vlaneseq
    %v899 = vshrl.u32 %v898, 7
    %v900 = vsub.s32 0, %v899
    %v901 = vrot.slane %v897, %v900
    %903 = vrot.lane.b32.xlu0 %v892, 32
    %v904 = vpop.permute.xlu0 %903
    %v909 = vunpack.c.l.b16 %v893
    %v910 = vunpack.c.l.b16 %v894
    %v911 = vunpack.c.l.b16 %v895
    %v912 = vunpack.c.l.b16 %v896
    %v913 = vpack.c.b16 %v910, %v909
    %v914 = vpack.c.b16 %v912, %v911
    %v918 = vsel %vm179, %v904, 0
    %920 = vmatprep.subr.bf16.mxu0 0
    %921 = vmatpush1.bf16.msra.mxu0 0
    %922 = vmatprep.subr.bf16.mxu0 0
    %923 = vmatpush1.bf16.msra.mxu0 0
    %924 = vmatprep.subr.bf16.mxu0 0
    %925 = vmatpush1.bf16.msra.mxu0 0
    %926 = vmatprep.subr.bf16.mxu0 0
    %927 = vmatpush1.bf16.msra.mxu0 0
    %928 = vmatprep.subr.bf16.mxu0 0
    %929 = vmatpush1.bf16.msra.mxu0 0
    %930 = vmatprep.subr.bf16.mxu0 0
    %931 = vmatpush1.bf16.msra.mxu0 0
    %932 = vmatprep.subr.bf16.mxu0 0
    %933 = vmatpush1.bf16.msra.mxu0 %v914
    %934 = vmatprep.subr.bf16.mxu0 0
    %935 = vmatpush1.bf16.msra.mxu0 %v913
    %936 = vmatprep.subr.bf16.mxu0 0
    %937 = vmatpush2.bf16.msra.mxu0 0
    %938 = vmatprep.subr.bf16.mxu0 0
    %939 = vmatpush2.bf16.msra.mxu0 0
    %940 = vmatprep.subr.bf16.mxu0 0
    %941 = vmatpush2.bf16.msra.mxu0 0
    %942 = vmatprep.subr.bf16.mxu0 0
    %943 = vmatpush2.bf16.msra.mxu0 0
    %944 = vmatprep.subr.bf16.mxu0 0
    %945 = vmatpush2.bf16.msra.mxu0 0
    %946 = vmatprep.subr.bf16.mxu0 0
    %947 = vmatpush2.bf16.msra.mxu0 0
    %948 = vmatprep.subr.bf16.mxu0 0
    %949 = vmatpush2.bf16.msra.mxu0 0
    %950 = vmatprep.subr.bf16.mxu0 0
    %951 = vmatpush2.bf16.msra.mxu0 0
    %952 = vmatprep.mubr.bf16.mxu0 0
    %953 = vmatmul.mubr.bf16.gmra.mxu0 %v918
    %v954 = vpop.f32.mrf.mxu0
    %v955 = vadd.f32 %v901, %v954
    %v956 = vpop.f32.mrf.mxu0
    %v957 = vpop.f32.mrf.mxu0
    %v958 = vpop.f32.mrf.mxu0
    %959 = vdwg.mxu0
    %960 = vst [vmem:[#allocation14] sm:$0xff] %v955
    // Predicated region
    $region66: #{tpu_custom_call.1} parent=1 // pred_check
      _
    $region67: #{tpu_custom_call.1} parent=1 // pred_check_branch
      %962 = sbr.rel (0) target = $region69
    $region68: #{tpu_custom_call.1} parent=1 // pred_region
      %s964 = ssub.s32 128, 128
      %965 = vsyncadd [#allocation4], %s964
      %s967 = sshll.u32 [#allocation14], 4
      %s968 = int_to_ptr.vmem [resolvable:$true] %s967
      %970 = dma.vmem_to_hbm [thread:$0]  %s968, 128, %s8, [#allocation4]
    $region69: #{tpu_custom_call.1} parent=1 // pred_fallthru
      _
    // Predicated region
    $region70: #{tpu_custom_call.1} parent=1 // pred_check
      _
    $region71: #{tpu_custom_call.1} parent=1 // pred_check_branch
      %972 = sbr.rel (0) target = $region73
    $region72: #{tpu_custom_call.1} parent=1 // pred_region
      %s974 = ssub.s32 128, 128
      %975 = vsyncadd [#allocation16], %s974
      %s977 = sshll.u32 [#allocation15], 4
      %s978 = int_to_ptr.vmem [resolvable:$true] %s977
      %980 = dma.vmem_to_hbm [thread:$0]  %s978, 128, %s9, [#allocation16]
    $region73: #{tpu_custom_call.1} parent=1 // pred_fallthru
      _
    // Predicated region
    $region74: #{tpu_custom_call.1} parent=1 // pred_check
      _
    $region75: #{tpu_custom_call.1} parent=1 // pred_check_branch
      %982 = sbr.rel (0) target = $region77
    $region76: #{tpu_custom_call.1} parent=1 // pred_region
      %s984 = ssub.s32 128, 128
      %985 = vsyncadd [#allocation16], %s984
      %s987 = sshll.u32 [#allocation17], 4
      %s988 = int_to_ptr.vmem [resolvable:$true] %s987
      %990 = dma.vmem_to_hbm [thread:$0]  %s988, 128, %s10, [#allocation16]
    $region77: #{tpu_custom_call.1} parent=1 // pred_fallthru
      _
    // Predicated region
    $region78: #{tpu_custom_call.1} parent=1 // pred_check
      _
    $region79: #{tpu_custom_call.1} parent=1 // pred_check_branch
      %992 = sbr.rel (0) target = $region81
    $region80: #{tpu_custom_call.1} parent=1 // pred_region
      %993 = dma.done [#allocation4], 128
    $region81: #{tpu_custom_call.1} parent=1 // pred_fallthru
      _
    // Predicated region
    $region82: #{tpu_custom_call.1} parent=1 // pred_check
      _
    $region83: #{tpu_custom_call.1} parent=1 // pred_check_branch
      %995 = sbr.rel (0) target = $region85
    $region84: #{tpu_custom_call.1} parent=1 // pred_region
      %996 = dma.done [#allocation16], 128
    $region85: #{tpu_custom_call.1} parent=1 // pred_fallthru
      _
    // Predicated region
    $region86: #{tpu_custom_call.1} parent=1 // pred_check
      _
    $region87: #{tpu_custom_call.1} parent=1 // pred_check_branch
      %998 = sbr.rel (0) target = $region89
    $region88: #{tpu_custom_call.1} parent=1 // pred_region
      %999 = dma.done [#allocation16], 128
    $region89: #{tpu_custom_call.1} parent=1 // pred_fallthru
      _
    %1000 = vsyncpa [#allocation3], 1
    %1001 = vsyncpa [#allocation6], 1
    %1002 = vsyncpa [#allocation9], 1
    %1003 = vsyncpa [#allocation12], 1
    %1004 = vsyncpa [#allocation4], 1
    %1005 = vsyncpa [#allocation16], 1

</llo_original>
